<compile_context>
chip_gen: v7x
topology: tpu7x:2x2x1
jax: 0.10.0
libtpu: 0.0.40
codegen_flags: <defaults>
</compile_context>

<pallas_src>
import jax
import jax.numpy as jnp
from jax.experimental import pallas as pl
from jax.experimental.pallas import tpu as pltpu


def _t2l_folded_kernel(x_ref, smat_ref, bias_ref, o_ref):
    # x_ref:    (tm, R)    native input dtype
    # smat_ref: (R, R*H)   f32 block-diagonal slope matrix
    # bias_ref: (1, R*H)   f32 bias tiled R times
    # o_ref:    (tm, R*H)  lane-dense output block (R*H == 128)
    x = x_ref[...].astype(jnp.float32)
    acc = jnp.dot(x, smat_ref[...], preferred_element_type=jnp.float32)
    o_ref[...] = (acc + bias_ref[...]).astype(o_ref.dtype)


def _t2l_broadcast_kernel(x_ref, slope_ref, bias_ref, o_ref):
    # Fallback (H >= 128 or 128 % H != 0): plain broadcasted multiply-add.
    # x_ref: (tm, 1), slope_ref/bias_ref: (1, H), o_ref: (tm, H)
    x = x_ref[...].astype(jnp.float32)
    o_ref[...] = (x * slope_ref[...] + bias_ref[...]).astype(o_ref.dtype)


def _choose_block_rows(M, row_bytes, target_bytes=2 << 20, max_rows=4096):
    """Largest row count <= min(max_rows, target_bytes/row_bytes) that is a
    multiple of 8 (sublane rule) and divides M; falls back to the full M."""
    t = int(min(max_rows, max(8, target_bytes // row_bytes)))
    t -= t % 8
    if M <= t:
        return M
    while t >= 8:
        if M % t == 0:
            return t
        t -= 8
    return M  # no 8-aligned divisor of M; single full block (rare, small M)


def time2linear(x, slope, bias, *, block_rows=None, out_dtype=jnp.float32):
    """out[b, s, h] = float(x[b, s]) * slope[h] + bias[h].

    x: (B, S), any real dtype.  slope, bias: (H,).  Returns (B, S, H) in
    out_dtype (float32 by default, matching the PyTorch module's `.float()`).
    """
    B, S = x.shape
    H = slope.shape[0]
    N = B * S

    slope_f = slope.astype(jnp.float32)
    bias_f = bias.astype(jnp.float32)

    # Fold rows into lanes when H divides 128 -> lane-dense output blocks.
    use_fold = (H < 128) and (128 % H == 0) and (N % (128 // H) == 0)
    if use_fold:
        R = 128 // H
        W = R * H                       # == 128
        M = N // R
        x2 = x.reshape(M, R)            # native dtype; cast happens in-kernel
        # smat[r, r*H + h] = slope[h]   (block-diagonal expansion, built once)
        smat = jnp.kron(jnp.eye(R, dtype=jnp.float32), slope_f.reshape(1, H))
        bias_t = jnp.tile(bias_f, R).reshape(1, W)
        kernel = _t2l_folded_kernel
        x_cols = R
        p1, p2 = smat, bias_t
    else:
        R = 1
        W = H
        M = N
        x2 = x.reshape(M, 1)
        kernel = _t2l_broadcast_kernel
        x_cols = 1
        p1, p2 = slope_f.reshape(1, H), bias_f.reshape(1, H)

    # Output-block sizing (~2 MiB of output rows; VMEM footprint stays well
    # under the scoped limits even with double buffering on all generations).
    row_bytes = max(W, 128) * jnp.dtype(out_dtype).itemsize
    if block_rows is None:
        block_rows = _choose_block_rows(M, row_bytes)
    elif block_rows != M:
        assert block_rows % 8 == 0, "block_rows must be a multiple of 8"
        assert M % block_rows == 0, "block_rows must divide the folded row count"
    tm = block_rows

    out = pl.pallas_call(
        kernel,
        out_shape=jax.ShapeDtypeStruct((M, W), out_dtype),
        grid_spec=pltpu.PrefetchScalarGridSpec(
            num_scalar_prefetch=0,
            grid=(M // tm,),
            in_specs=[
                pl.BlockSpec((tm, x_cols), lambda i: (i, 0)),
                pl.BlockSpec(p1.shape, lambda i: (0, 0)),   # resident in VMEM
                pl.BlockSpec(p2.shape, lambda i: (0, 0)),   # resident in VMEM
            ],
            out_specs=pl.BlockSpec((tm, W), lambda i: (i, 0)),
        ),
        compiler_params=pltpu.CompilerParams(
            dimension_semantics=("parallel",),
        ),
    )(x2, p1, p2)

    # Row-major fold: (M, R*H) is bit-identical to the row-major (N, H) buffer.
    return out.reshape(B, S, H)


def _reference(x, slope, bias):
    return (x[..., None].astype(jnp.float32) * slope.astype(jnp.float32)
            + bias.astype(jnp.float32))


if __name__ == "__main__":
    # Small deterministic example: batch=2, seq=8, hidden=32
    B, S, H = 2, 8, 32
    key = jax.random.PRNGKey(0)
    kx, ks, kb, kx2 = jax.random.split(key, 4)

    x = jax.random.normal(kx, (B, S), dtype=jnp.float32)
    slope = jax.random.normal(ks, (H,), dtype=jnp.float32)
    bias = jax.random.normal(kb, (H,), dtype=jnp.float32)

    out = jax.block_until_ready(time2linear(x, slope, bias))
    ref = _reference(x, slope, bias)
    assert out.shape == (B, S, H), out.shape
    assert out.dtype == jnp.float32
    assert jnp.allclose(out, ref, atol=1e-5, rtol=1e-5), "mismatch vs reference"

    # Secondary check: multi-step grid (pipelined path) + native-dtype (bf16)
    # input cast in-kernel.  Still tiny (2 * 1024 * 32 f32 output = 256 KiB).
    x_big = jax.random.normal(kx2, (2, 1024), dtype=jnp.bfloat16)
    out_big = jax.block_until_ready(
        time2linear(x_big, slope, bias, block_rows=64))   # M=512 -> grid=(8,)
    ref_big = _reference(x_big, slope, bias)
    assert out_big.shape == (2, 1024, H)
    assert jnp.allclose(out_big, ref_big, atol=1e-5, rtol=1e-5)

    print("KERNEL_OK")
</pallas_src>

<mosaic_0001>
module attributes {stable_mosaic.version = 11 : i64} {
  func.func @_t2l_folded_kernel(%arg0: i32, %arg1: memref<4x4xf32, #tpu.memory_space<vmem>>, %arg2: memref<4x128xf32, #tpu.memory_space<vmem>>, %arg3: memref<1x128xf32, #tpu.memory_space<vmem>>, %arg4: memref<4x128xf32, #tpu.memory_space<vmem>>) attributes {dimension_semantics = [#tpu.dimension_semantics<parallel>], iteration_bounds = array<i64: 1>, scalar_prefetch = 0 : i64, scratch_operands = 0 : i64, tpu.core_type = #tpu.core_type<tc>, window_params = [{transform_indices = @transform_0, window_bounds = array<i64: 4, 4>}, {pipeline_mode = #tpu.pipeline_mode<synchronous>, transform_indices = @transform_1, window_bounds = array<i64: 4, 128>}, {pipeline_mode = #tpu.pipeline_mode<synchronous>, transform_indices = @transform_2, window_bounds = array<i64: 1, 128>}, {transform_indices = @transform_3, window_bounds = array<i64: 4, 128>}]} {
    %c0 = arith.constant 0 : index
    %c0_0 = arith.constant 0 : index
    %0 = vector.load %arg1[%c0, %c0_0] : memref<4x4xf32, #tpu.memory_space<vmem>>, vector<4x4xf32>
    %c0_1 = arith.constant 0 : index
    %c0_2 = arith.constant 0 : index
    %1 = vector.load %arg2[%c0_1, %c0_2] : memref<4x128xf32, #tpu.memory_space<vmem>>, vector<4x128xf32>
    %cst = arith.constant dense<0.000000e+00> : vector<4x128xf32>
    %2 = tpu.matmul %0, %1, %cst {dimension_numbers = #tpu.dot_dimension_numbers<[1], [0], [0], [1], [0, 0, 1, 1], [], []>} : vector<4x4xf32>, vector<4x128xf32>, vector<4x128xf32> -> vector<4x128xf32>
    %c0_3 = arith.constant 0 : index
    %c0_4 = arith.constant 0 : index
    %3 = vector.load %arg3[%c0_3, %c0_4] : memref<1x128xf32, #tpu.memory_space<vmem>>, vector<1x128xf32>
    %4 = vector.broadcast %3 : vector<1x128xf32> to vector<4x128xf32>
    %5 = arith.addf %2, %4 : vector<4x128xf32>
    %c0_5 = arith.constant 0 : index
    %c0_6 = arith.constant 0 : index
    %6 = vector.load %arg4[%c0_5, %c0_6] : memref<4x128xf32, #tpu.memory_space<vmem>>, vector<4x128xf32>
    tpu.vector_store %arg4[%c0_5, %c0_6], %5 {strides = array<i32>} : memref<4x128xf32, #tpu.memory_space<vmem>>, vector<4x128xf32>,
    return
  }
  func.func @transform_0(%arg0: i32) -> (i32, i32) {
    %c0_i32 = arith.constant 0 : i32
    %c0_i32_0 = arith.constant 0 : i32
    return %arg0, %c0_i32 : i32, i32
  }
  func.func @transform_1(%arg0: i32) -> (i32, i32) {
    %c0_i32 = arith.constant 0 : i32
    %c0_i32_0 = arith.constant 0 : i32
    %c0_i32_1 = arith.constant 0 : i32
    return %c0_i32, %c0_i32_0 : i32, i32
  }
  func.func @transform_2(%arg0: i32) -> (i32, i32) {
    %c0_i32 = arith.constant 0 : i32
    %c0_i32_0 = arith.constant 0 : i32
    %c0_i32_1 = arith.constant 0 : i32
    return %c0_i32, %c0_i32_0 : i32, i32
  }
  func.func @transform_3(%arg0: i32) -> (i32, i32) {
    %c0_i32 = arith.constant 0 : i32
    %c0_i32_0 = arith.constant 0 : i32
    return %arg0, %c0_i32 : i32, i32
  }
}

</mosaic_0001>

<llo_original>
// kernel: tpu_custom_call.1
$region0: #{tpu_custom_call.1}
  #allocation0 [shape = 'u32[]', space=smem, size = 0x4, offset = 0x4, fixed_abs, tag = 'smem constant byte address 0x4 - core index']
  #allocation1 [shape = 'u32[144,128]{1,0:T(1,128)}', space=vmem, size = 0x12000, scoped, tag = 'internal scratch']
  %s0 = inlined_call_operand.hbm [shape: f32[4,4], index: 0, kind: input, shape index: {}]
  %s1 = inlined_call_operand.hbm [shape: f32[4,128], index: 1, kind: input, shape index: {}]
  %s2 = inlined_call_operand.vmem [shape: f32[1,128], index: 2, kind: input, shape index: {}]
  %s3 = inlined_call_operand.hbm [shape: f32[4,128], index: 3, kind: output, shape index: {}]
  %s4 = sld [smem:[#allocation0]]
  $region30: #{tpu_custom_call.1} parent=0
    _
  %s6 = ssub.s32 1, %s4
  %s7 = scalar_select 0, %s6, %s4
  $region1: #{tpu_custom_call.1} parent=0
    #allocation2 [shape = 'u8[2048]{0}', space=vmem, size = 0x800, scoped, tag = 'input window, operand 0, single buffered']
    #allocation3 [shape = 's32[1]{0}', space=sflag, size = 0x4, scoped, tag = 'scoped memory for tpu_custom_call.1']
    #allocation4 [shape = 's32[1]{0}', space=sflag, size = 0x4, scoped, tag = 'scoped memory for tpu_custom_call.1']
    #allocation5 [shape = 'u8[2048]{0}', space=vmem, size = 0x800, scoped, tag = 'input window, operand 1, single buffered']
    #allocation6 [shape = 's32[1]{0}', space=sflag, size = 0x4, scoped, tag = 'scoped memory for tpu_custom_call.1']
    #allocation7 [shape = 'u8[2048]{0}', space=vmem, size = 0x800, scoped, tag = 'output window, operand 0, single buffered']
    %8 = vsyncpa [#allocation3], 0
    %9 = vsyncpa [#allocation6], 0
    %10 = vsyncpa [#allocation4], 0
    // Predicated region
    $region2: #{tpu_custom_call.1} parent=1 // pred_check
      _
    $region3: #{tpu_custom_call.1} parent=1 // pred_check_branch
      %12 = sbr.rel (0) target = $region5
    $region4: #{tpu_custom_call.1} parent=1 // pred_region
      %s14 = ssub.s32 64, 64
      %15 = vsyncadd [#allocation3], %s14
      %s17 = sshll.u32 [#allocation2], 4
      %s18 = int_to_ptr.vmem [resolvable:$true] %s17
      %20 = dma.hbm_to_vmem [thread:$0]  %s0, 64, %s18, [#allocation3]
    $region5: #{tpu_custom_call.1} parent=1 // pred_fallthru
      _
    // Predicated region
    $region6: #{tpu_custom_call.1} parent=1 // pred_check
      _
    $region7: #{tpu_custom_call.1} parent=1 // pred_check_branch
      %22 = sbr.rel (0) target = $region9
    $region8: #{tpu_custom_call.1} parent=1 // pred_region
      %s24 = ssub.s32 64, 64
      %25 = vsyncadd [#allocation6], %s24
      %s27 = sshll.u32 [#allocation5], 4
      %s28 = int_to_ptr.vmem [resolvable:$true] %s27
      %30 = dma.hbm_to_vmem [thread:$0]  %s1, 64, %s28, [#allocation6]
    $region9: #{tpu_custom_call.1} parent=1 // pred_fallthru
      _
    // Predicated region
    $region10: #{tpu_custom_call.1} parent=1 // pred_check
      _
    $region11: #{tpu_custom_call.1} parent=1 // pred_check_branch
      %32 = sbr.rel (0) target = $region13
    $region12: #{tpu_custom_call.1} parent=1 // pred_region
      _
    $region13: #{tpu_custom_call.1} parent=1 // pred_fallthru
      _
    // Predicated region
    $region14: #{tpu_custom_call.1} parent=1 // pred_check
      _
    $region15: #{tpu_custom_call.1} parent=1 // pred_check_branch
      %34 = sbr.rel (0) target = $region17
    $region16: #{tpu_custom_call.1} parent=1 // pred_region
      %35 = dma.done [#allocation3], 64
    $region17: #{tpu_custom_call.1} parent=1 // pred_fallthru
      _
    // Predicated region
    $region18: #{tpu_custom_call.1} parent=1 // pred_check
      _
    $region19: #{tpu_custom_call.1} parent=1 // pred_check_branch
      %37 = sbr.rel (0) target = $region21
    $region20: #{tpu_custom_call.1} parent=1 // pred_region
      %38 = dma.done [#allocation6], 64
    $region21: #{tpu_custom_call.1} parent=1 // pred_fallthru
      _
    %v39 = vld [vmem:[#allocation2] sm:$0xf]
    %v40 = vld [vmem:[#allocation5] sm:$0xf]
    %v41 = vld [vmem:[%s2] sm:$0x1]
    %v43 = vlaneseq
    %v44 = vshrl.u32 %v43, 7
    %v45 = vsub.s32 0, %v44
    %v46 = vrot.slane %v41, %v45
    %vm48 = vcmask 31744
    %v50 = vsel %vm48, %v39, 0
    %vm52 = vcmask 1043456
    %v54 = vsel %vm52, %v40, 0
    %56 = vmatprep.subr.mxu0 0.0
    %57 = vmatpush1.msra.mxu0 %v54
    %58 = vmatprep.subr.mxu0 0.0
    %59 = vmatpush1.msra.mxu0 0.0
    %60 = vmatprep.subr.mxu0 0.0
    %61 = vmatpush1.msra.mxu0 0.0
    %62 = vmatprep.subr.mxu0 0.0
    %63 = vmatpush1.msra.mxu0 0.0
    %64 = vmatprep.subr.mxu0 0.0
    %65 = vmatpush1.msra.mxu0 0.0
    %66 = vmatprep.subr.mxu0 0.0
    %67 = vmatpush1.msra.mxu0 0.0
    %68 = vmatprep.subr.mxu0 0.0
    %69 = vmatpush1.msra.mxu0 0.0
    %70 = vmatprep.subr.mxu0 0.0
    %71 = vmatpush1.msra.mxu0 0.0
    %72 = vmatprep.subr.mxu0 0.0
    %73 = vmatpush1.msra.mxu0 0.0
    %74 = vmatprep.subr.mxu0 0.0
    %75 = vmatpush1.msra.mxu0 0.0
    %76 = vmatprep.subr.mxu0 0.0
    %77 = vmatpush1.msra.mxu0 0.0
    %78 = vmatprep.subr.mxu0 0.0
    %79 = vmatpush1.msra.mxu0 0.0
    %80 = vmatprep.subr.mxu0 0.0
    %81 = vmatpush1.msra.mxu0 0.0
    %82 = vmatprep.subr.mxu0 0.0
    %83 = vmatpush1.msra.mxu0 0.0
    %84 = vmatprep.subr.mxu0 0.0
    %85 = vmatpush1.msra.mxu0 0.0
    %86 = vmatprep.subr.mxu0 0.0
    %87 = vmatpush1.msra.mxu0 0.0
    %88 = vmatprep.subr.mxu0 0.0
    %89 = vmatpush1.msra.mxu0 0.0
    %90 = vmatprep.subr.mxu0 0.0
    %91 = vmatpush1.msra.mxu0 0.0
    %92 = vmatprep.subr.mxu0 0.0
    %93 = vmatpush1.msra.mxu0 0.0
    %94 = vmatprep.subr.mxu0 0.0
    %95 = vmatpush1.msra.mxu0 0.0
    %96 = vmatprep.subr.mxu0 0.0
    %97 = vmatpush1.msra.mxu0 0.0
    %98 = vmatprep.subr.mxu0 0.0
    %99 = vmatpush1.msra.mxu0 0.0
    %100 = vmatprep.subr.mxu0 0.0
    %101 = vmatpush1.msra.mxu0 0.0
    %102 = vmatprep.subr.mxu0 0.0
    %103 = vmatpush1.msra.mxu0 0.0
    %104 = vmatprep.subr.mxu0 0.0
    %105 = vmatpush1.msra.mxu0 0.0
    %106 = vmatprep.subr.mxu0 0.0
    %107 = vmatpush1.msra.mxu0 0.0
    %108 = vmatprep.subr.mxu0 0.0
    %109 = vmatpush1.msra.mxu0 0.0
    %110 = vmatprep.subr.mxu0 0.0
    %111 = vmatpush1.msra.mxu0 0.0
    %112 = vmatprep.subr.mxu0 0.0
    %113 = vmatpush1.msra.mxu0 0.0
    %114 = vmatprep.subr.mxu0 0.0
    %115 = vmatpush1.msra.mxu0 0.0
    %116 = vmatprep.subr.mxu0 0.0
    %117 = vmatpush1.msra.mxu0 0.0
    %118 = vmatprep.subr.mxu0 0.0
    %119 = vmatpush1.msra.mxu0 0.0
    %120 = vmatprep.mubr.f32.mxu0 0.0
    %121 = vmatmul.mubr.f32.gmra.mrb[0].mxu0 %v50
    %v122 = vpop.f32.mrb[0].mxu0
    %v123 = vadd.f32 %v46, %v122
    %v124 = vpop.f32.mrb[0].mxu0
    %125 = vdwg.mxu0
    %126 = vst [vmem:[#allocation7] sm:$0xf] %v123
    // Predicated region
    $region22: #{tpu_custom_call.1} parent=1 // pred_check
      _
    $region23: #{tpu_custom_call.1} parent=1 // pred_check_branch
      %128 = sbr.rel (0) target = $region25
    $region24: #{tpu_custom_call.1} parent=1 // pred_region
      %s130 = ssub.s32 64, 64
      %131 = vsyncadd [#allocation4], %s130
      %s133 = sshll.u32 [#allocation7], 4
      %s134 = int_to_ptr.vmem [resolvable:$true] %s133
      %136 = dma.vmem_to_hbm [thread:$0]  %s134, 64, %s3, [#allocation4]
    $region25: #{tpu_custom_call.1} parent=1 // pred_fallthru
      _
    // Predicated region
    $region26: #{tpu_custom_call.1} parent=1 // pred_check
      _
    $region27: #{tpu_custom_call.1} parent=1 // pred_check_branch
      %138 = sbr.rel (0) target = $region29
    $region28: #{tpu_custom_call.1} parent=1 // pred_region
      %139 = dma.done [#allocation4], 64
    $region29: #{tpu_custom_call.1} parent=1 // pred_fallthru
      _
    %140 = vsyncpa [#allocation3], 1
    %141 = vsyncpa [#allocation6], 1
    %142 = vsyncpa [#allocation4], 1

</llo_original>
